<compile_context>
chip_gen: v6e
topology: v6e:2x2x1
jax: 0.10.0
libtpu: 0.0.40
codegen_flags: <defaults>
</compile_context>

<pallas_src>
import jax
import jax.numpy as jnp
from jax.experimental import pallas as pl
from jax.experimental.pallas import tpu as pltpu


def _gcn_fused_kernel(x_ref, a_ref, w_ref, b_ref, out_ref):
    # x_ref  : (N, F_in)         node features for this batch element
    # a_ref  : (N, E*N)          [adj_0 | ... | adj_{E-1}]           (lane-concat)
    # w_ref  : (F_in, (E+1)*H)   [W_0 | ... | W_{E-1} | W_res]       (lane-concat)
    # b_ref  : (1, (E+1)*H)      [b_0 | ... | b_{E-1} | b_res]
    # out_ref: (N, H)
    n = x_ref.shape[0]
    h = out_ref.shape[-1]
    num_edges = a_ref.shape[-1] // n          # E (static)

    # One fused Linear for all edge types + residual: (N, F) @ (F, (E+1)*H).
    h_all = (
        jnp.dot(x_ref[...], w_ref[...], preferred_element_type=jnp.float32)
        + b_ref[...]
    )

    # Residual branch = last H-lane block (x @ W_res + b_res).
    h_res = h_all[:, num_edges * h:(num_edges + 1) * h]

    # Restack the E edge lane-blocks (H columns each) into a sublane-stacked
    # (E*N, H) operand for the fused message-passing matmul.
    h_edges = jnp.concatenate(
        [h_all[:, e * h:(e + 1) * h] for e in range(num_edges)], axis=0
    )

    # One fused matmul: message passing over all edge types: (N, E*N) @ (E*N, H),
    # then residual add + activation.
    msg = jnp.dot(a_ref[...], h_edges, preferred_element_type=jnp.float32)
    out_ref[...] = jnp.tanh(msg + h_res).astype(out_ref.dtype)


def graph_convolution_layer(x, adj, w_stack, b_stack, w_res, b_res):
    """
    x       : (B, N, F_in)   node features
    adj     : (B, E, N, N)   per-edge-type adjacency
    w_stack : (E, F_in, H)   per-edge Linear weights (stored transposed: x @ W)
    b_stack : (E, H)         per-edge Linear biases
    w_res   : (F_in, H)      residual Linear weight (transposed)
    b_res   : (1, H)         residual Linear bias
    returns : (B, N, H)
    """
    B, N, F_in = x.shape
    E = adj.shape[1]
    H = w_stack.shape[-1]

    # ---- wrapper-side layout plumbing (reshape/transpose/concat only) ----
    # Lane-concatenate per-edge weights/biases and append the residual block.
    w_cat = jnp.concatenate(
        [jnp.transpose(w_stack, (1, 0, 2)).reshape(F_in, E * H), w_res], axis=-1
    )                                                     # (F_in, (E+1)*H)
    b_cat = jnp.concatenate(
        [b_stack.reshape(1, E * H), b_res.reshape(1, H)], axis=-1
    )                                                     # (1, (E+1)*H)
    # Lane-concatenate per-edge adjacencies: a_cat[b, n, e*N + m] = adj[b, e, n, m].
    a_cat = jnp.transpose(adj, (0, 2, 1, 3)).reshape(B, N, E * N)

    return pl.pallas_call(
        _gcn_fused_kernel,
        out_shape=jax.ShapeDtypeStruct((B, N, H), x.dtype),
        grid_spec=pltpu.PrefetchScalarGridSpec(
            num_scalar_prefetch=0,
            grid=(B,),
            in_specs=[
                pl.BlockSpec((None, N, F_in), lambda b: (b, 0, 0)),      # x[b]
                pl.BlockSpec((None, N, E * N), lambda b: (b, 0, 0)),     # adj_cat[b]
                pl.BlockSpec((F_in, (E + 1) * H), lambda b: (0, 0)),     # W_cat (resident)
                pl.BlockSpec((1, (E + 1) * H), lambda b: (0, 0)),        # b_cat (resident)
            ],
            out_specs=pl.BlockSpec((None, N, H), lambda b: (b, 0, 0)),
        ),
        compiler_params=pltpu.CompilerParams(
            dimension_semantics=("parallel",),   # v7x: the 2 TCs split the batch
        ),
    )(x, a_cat, w_cat, b_cat)


def _reference(x, adj, w_stack, b_stack, w_res, b_res):
    # Plain-JAX reference mirroring the PyTorch forward (hidden=None, eval dropout).
    h = jnp.einsum("bnf,efh->benh", x, w_stack) + b_stack[None, :, None, :]
    h = jnp.einsum("benm,bemh->benh", adj, h)
    out = h.sum(axis=1) + (x @ w_res + b_res)
    return jnp.tanh(out)


if __name__ == "__main__":
    # Small, deterministic shapes consistent with the module.
    B, N = 2, 16           # batch, number of graph nodes
    F_IN = 8               # in_features
    H = 32                 # hidden_features
    E = 4                  # edge_dim

    key = jax.random.PRNGKey(0)
    k_x, k_adj, k_w, k_b, k_wr, k_br = jax.random.split(key, 6)

    x = jax.random.normal(k_x, (B, N, F_IN), dtype=jnp.float32)
    adj = jax.random.uniform(k_adj, (B, E, N, N), dtype=jnp.float32)

    # nn.Linear(in_features, hidden_features) weights: (H, F_in); stored transposed.
    w_stack = 0.1 * jax.random.normal(k_w, (E, F_IN, H), dtype=jnp.float32)
    b_stack = 0.1 * jax.random.normal(k_b, (E, H), dtype=jnp.float32)
    w_res = 0.1 * jax.random.normal(k_wr, (F_IN, H), dtype=jnp.float32)
    b_res = 0.1 * jax.random.normal(k_br, (1, H), dtype=jnp.float32)

    out = graph_convolution_layer(x, adj, w_stack, b_stack, w_res, b_res)
    out = jax.block_until_ready(out)

    ref = _reference(x, adj, w_stack, b_stack, w_res, b_res)
    assert out.shape == (B, N, H)
    assert jnp.allclose(out, ref, atol=1e-5, rtol=1e-5), "mismatch vs reference"

    print("KERNEL_OK")
</pallas_src>

<mosaic_0001>
module attributes {stable_mosaic.version = 11 : i64} {
  func.func @_gcn_fused_kernel(%arg0: i32, %arg1: memref<1x16x8xf32, #tpu.memory_space<vmem>>, %arg2: memref<1x16x64xf32, #tpu.memory_space<vmem>>, %arg3: memref<8x160xf32, #tpu.memory_space<vmem>>, %arg4: memref<1x160xf32, #tpu.memory_space<vmem>>, %arg5: memref<1x16x32xf32, #tpu.memory_space<vmem>>) attributes {dimension_semantics = [#tpu.dimension_semantics<parallel>], iteration_bounds = array<i64: 2>, scalar_prefetch = 0 : i64, scratch_operands = 0 : i64, tpu.core_type = #tpu.core_type<tc>, window_params = [{transform_indices = @transform_0, window_bounds = array<i64: 1, 16, 8>}, {transform_indices = @transform_1, window_bounds = array<i64: 1, 16, 64>}, {pipeline_mode = #tpu.pipeline_mode<synchronous>, transform_indices = @transform_2, window_bounds = array<i64: 8, 160>}, {pipeline_mode = #tpu.pipeline_mode<synchronous>, transform_indices = @transform_3, window_bounds = array<i64: 1, 160>}, {transform_indices = @transform_4, window_bounds = array<i64: 1, 16, 32>}]} {
    %c0 = arith.constant 0 : index
    %c0_0 = arith.constant 0 : index
    %c0_1 = arith.constant 0 : index
    %0 = vector.load %arg1[%c0, %c0_0, %c0_1] : memref<1x16x8xf32, #tpu.memory_space<vmem>>, vector<1x16x8xf32>
    %1 = vector.shape_cast %0 : vector<1x16x8xf32> to vector<16x8xf32>
    %c0_2 = arith.constant 0 : index
    %c0_3 = arith.constant 0 : index
    %2 = vector.load %arg3[%c0_2, %c0_3] : memref<8x160xf32, #tpu.memory_space<vmem>>, vector<8x160xf32>
    %cst = arith.constant dense<0.000000e+00> : vector<16x160xf32>
    %3 = tpu.matmul %1, %2, %cst {dimension_numbers = #tpu.dot_dimension_numbers<[1], [0], [0], [1], [0, 0, 1, 1], [], []>} : vector<16x8xf32>, vector<8x160xf32>, vector<16x160xf32> -> vector<16x160xf32>
    %c0_4 = arith.constant 0 : index
    %c0_5 = arith.constant 0 : index
    %4 = vector.load %arg4[%c0_4, %c0_5] : memref<1x160xf32, #tpu.memory_space<vmem>>, vector<1x160xf32>
    %5 = vector.broadcast %4 : vector<1x160xf32> to vector<16x160xf32>
    %6 = arith.addf %3, %5 : vector<16x160xf32>
    %7 = vector.extract_strided_slice %6 {offsets = [0, 128], sizes = [16, 32], strides = [1, 1]} : vector<16x160xf32> to vector<16x32xf32>
    %8 = vector.extract_strided_slice %6 {offsets = [0, 0], sizes = [16, 32], strides = [1, 1]} : vector<16x160xf32> to vector<16x32xf32>
    %9 = vector.extract_strided_slice %6 {offsets = [0, 32], sizes = [16, 32], strides = [1, 1]} : vector<16x160xf32> to vector<16x32xf32>
    %10 = vector.extract_strided_slice %6 {offsets = [0, 64], sizes = [16, 32], strides = [1, 1]} : vector<16x160xf32> to vector<16x32xf32>
    %11 = vector.extract_strided_slice %6 {offsets = [0, 96], sizes = [16, 32], strides = [1, 1]} : vector<16x160xf32> to vector<16x32xf32>
    %12 = tpu.concatenate %8, %9, %10, %11 in 0 : vector<16x32xf32>, vector<16x32xf32>, vector<16x32xf32>, vector<16x32xf32> -> vector<64x32xf32>
    %c0_6 = arith.constant 0 : index
    %c0_7 = arith.constant 0 : index
    %c0_8 = arith.constant 0 : index
    %13 = vector.load %arg2[%c0_6, %c0_7, %c0_8] : memref<1x16x64xf32, #tpu.memory_space<vmem>>, vector<1x16x64xf32>
    %14 = vector.shape_cast %13 : vector<1x16x64xf32> to vector<16x64xf32>
    %cst_9 = arith.constant dense<0.000000e+00> : vector<16x32xf32>
    %15 = tpu.matmul %14, %12, %cst_9 {dimension_numbers = #tpu.dot_dimension_numbers<[1], [0], [0], [1], [0, 0, 1, 1], [], []>} : vector<16x64xf32>, vector<64x32xf32>, vector<16x32xf32> -> vector<16x32xf32>
    %16 = arith.addf %15, %7 : vector<16x32xf32>
    %17 = math.tanh %16 : vector<16x32xf32>
    %c0_10 = arith.constant 0 : index
    %c0_11 = arith.constant 0 : index
    %c0_12 = arith.constant 0 : index
    %18 = vector.load %arg5[%c0_10, %c0_11, %c0_12] : memref<1x16x32xf32, #tpu.memory_space<vmem>>, vector<1x16x32xf32>
    %19 = vector.shape_cast %18 : vector<1x16x32xf32> to vector<16x32xf32>
    %20 = vector.shape_cast %17 : vector<16x32xf32> to vector<1x16x32xf32>
    tpu.vector_store %arg5[%c0_10, %c0_11, %c0_12], %20 {strides = array<i32>} : memref<1x16x32xf32, #tpu.memory_space<vmem>>, vector<1x16x32xf32>,
    return
  }
  func.func @transform_0(%arg0: i32) -> (i32, i32, i32) {
    %c0_i32 = arith.constant 0 : i32
    %c0_i32_0 = arith.constant 0 : i32
    %c0_i32_1 = arith.constant 0 : i32
    return %arg0, %c0_i32, %c0_i32_0 : i32, i32, i32
  }
  func.func @transform_1(%arg0: i32) -> (i32, i32, i32) {
    %c0_i32 = arith.constant 0 : i32
    %c0_i32_0 = arith.constant 0 : i32
    %c0_i32_1 = arith.constant 0 : i32
    return %arg0, %c0_i32, %c0_i32_0 : i32, i32, i32
  }
  func.func @transform_2(%arg0: i32) -> (i32, i32) {
    %c0_i32 = arith.constant 0 : i32
    %c0_i32_0 = arith.constant 0 : i32
    %c0_i32_1 = arith.constant 0 : i32
    return %c0_i32, %c0_i32_0 : i32, i32
  }
  func.func @transform_3(%arg0: i32) -> (i32, i32) {
    %c0_i32 = arith.constant 0 : i32
    %c0_i32_0 = arith.constant 0 : i32
    %c0_i32_1 = arith.constant 0 : i32
    return %c0_i32, %c0_i32_0 : i32, i32
  }
  func.func @transform_4(%arg0: i32) -> (i32, i32, i32) {
    %c0_i32 = arith.constant 0 : i32
    %c0_i32_0 = arith.constant 0 : i32
    %c0_i32_1 = arith.constant 0 : i32
    return %arg0, %c0_i32, %c0_i32_0 : i32, i32, i32
  }
}

</mosaic_0001>

<llo_original>
// kernel: tpu_custom_call.1
$region0: #{tpu_custom_call.1}
  #allocation0 [shape = 'u32[]', space=smem, size = 0x4, offset = 0x4, fixed_abs, tag = 'smem constant byte address 0x4 - core index']
  #allocation1 [shape = 'u32[144,128]{1,0:T(1,128)}', space=vmem, size = 0x12000, scoped, tag = 'internal scratch']
  %s0 = inlined_call_operand.vmem [shape: f32[2,16,8], index: 0, kind: input, shape index: {}]
  %s1 = inlined_call_operand.vmem [shape: f32[2,16,64], index: 1, kind: input, shape index: {}]
  %s2 = inlined_call_operand.vmem [shape: f32[8,160], index: 2, kind: input, shape index: {}]
  %s3 = inlined_call_operand.vmem [shape: f32[1,160], index: 3, kind: input, shape index: {}]
  %s4 = inlined_call_operand.hbm [shape: f32[2,16,32], index: 4, kind: output, shape index: {}]
  %s5 = sld [smem:[#allocation0]]
  $region49: #{tpu_custom_call.1} parent=0
    _
  %s7 = ssub.s32 1, %s5
  %s8 = scalar_select 0, %s7, %s5
  $region1: #{tpu_custom_call.1} parent=0
    #allocation2 [shape = 'u8[16384]{0}', space=vmem, size = 0x4000, scoped, tag = 'output window, operand 0']
    #allocation3 [shape = 's32[2]{0}', space=sflag, size = 0x8, scoped, tag = 'scoped memory for tpu_custom_call.1']
    %9 = vsyncpa [#allocation3], 0
    %s10 = scalar_lea.sflag [#allocation3], 1
    %11 = vsyncpa %s10, 0
    loop: start=0, step=1, limit=4
    $region2: #{tpu_custom_call.1} parent=1 // loop_pre_header
      _
    $region3: #{tpu_custom_call.1} parent=1 // loop_header
      %s13 = sphi 0, %s17
      %p14 = scmp.ge.s32.totalorder %s13, 4
      %s23 = sphi 0, %s25
      %s26 = sphi 0, %s23
      %s27 = sphi 0, %s26
      %s43 = sphi 0, %s27
      %s49 = sphi 0, %s51
      %s52 = sphi 0, %s49
      %s53 = sphi 0, %s52
      %s69 = sphi 0, %s53
      %s73 = sphi 0, %s73
      %s75 = sphi 0, %s73
      %s76 = sphi 0, %s75
      %s90 = sphi 0, %s76
      %s94 = sphi 0, %s94
      %s96 = sphi 0, %s94
      %s97 = sphi 0, %s96
      %s111 = sphi 0, %s97
      %s117 = sphi 0, %s119
      %s120 = sphi 0, %s117
      %s121 = sphi 0, %s120
      %s137 = sphi 0, %s121
    $region4: #{tpu_custom_call.1} parent=1 // loop_header_branch
      %16 = sbr.rel (%p14) target = $region8
    $region5: #{tpu_custom_call.1} parent=1 // loop_body
      %s18 = ssub.s32 %s13, 1
      %s19 = ssub.s32 %s13, 2
      %s20 = sadd.s32 %s13, 1
      %s21 = ssub.s32 %s13, %s20
      %p22 = scmp.eq.s32.totalorder %s21, 0
      %s24 = sadd.s32 %s23, 1
      %s25 = scalar_select %p22, %s23, %s24
      %p28 = pneg %p22
      %p29 = scmp.eq.s32.totalorder %s13, 1
      %p30 = por %p28, %p29
      %p31 = scmp.ne.s32.totalorder %s23, %s26
      %p32 = scmp.eq.s32.totalorder %s13, 0
      %p33 = por %p31, %p32
      %p34 = scmp.ne.s32.totalorder %s23, %s26
      %p35 = scmp.eq.s32.totalorder %s18, 1
      %p36 = por %p34, %p35
      %p37 = scmp.ne.s32.totalorder %s26, %s27
      %p38 = scmp.eq.s32.totalorder %s18, 0
      %p39 = por %p37, %p38
      %p40 = scmp.ne.s32.totalorder %s26, %s27
      %p41 = scmp.eq.s32.totalorder %s19, 1
      %p42 = por %p40, %p41
      %p44 = scmp.ne.s32.totalorder %s27, %s43
      %p45 = scmp.eq.s32.totalorder %s19, 0
      %p46 = por %p44, %p45
      %s47 = ssub.s32 %s13, %s20
      %p48 = scmp.eq.s32.totalorder %s47, 0
      %s50 = sadd.s32 %s49, 1
      %s51 = scalar_select %p48, %s49, %s50
      %p54 = pneg %p48
      %p55 = scmp.eq.s32.totalorder %s13, 1
      %p56 = por %p54, %p55
      %p57 = scmp.ne.s32.totalorder %s49, %s52
      %p58 = scmp.eq.s32.totalorder %s13, 0
      %p59 = por %p57, %p58
      %p60 = scmp.ne.s32.totalorder %s49, %s52
      %p61 = scmp.eq.s32.totalorder %s18, 1
      %p62 = por %p60, %p61
      %p63 = scmp.ne.s32.totalorder %s52, %s53
      %p64 = scmp.eq.s32.totalorder %s18, 0
      %p65 = por %p63, %p64
      %p66 = scmp.ne.s32.totalorder %s52, %s53
      %p67 = scmp.eq.s32.totalorder %s19, 1
      %p68 = por %p66, %p67
      %p70 = scmp.ne.s32.totalorder %s53, %s69
      %p71 = scmp.eq.s32.totalorder %s19, 0
      %p72 = por %p70, %p71
      %s74 = sadd.s32 %s73, 1
      %p77 = scmp.eq.s32.totalorder %s13, 1
      %p78 = scmp.ne.s32.totalorder %s73, %s75
      %p79 = scmp.eq.s32.totalorder %s13, 0
      %p80 = por %p78, %p79
      %p81 = scmp.ne.s32.totalorder %s73, %s75
      %p82 = scmp.eq.s32.totalorder %s18, 1
      %p83 = por %p81, %p82
      %p84 = scmp.ne.s32.totalorder %s75, %s76
      %p85 = scmp.eq.s32.totalorder %s18, 0
      %p86 = por %p84, %p85
      %p87 = scmp.ne.s32.totalorder %s75, %s76
      %p88 = scmp.eq.s32.totalorder %s19, 1
      %p89 = por %p87, %p88
      %p91 = scmp.ne.s32.totalorder %s76, %s90
      %p92 = scmp.eq.s32.totalorder %s19, 0
      %p93 = por %p91, %p92
      %s95 = sadd.s32 %s94, 1
      %p98 = scmp.eq.s32.totalorder %s13, 1
      %p99 = scmp.ne.s32.totalorder %s94, %s96
      %p100 = scmp.eq.s32.totalorder %s13, 0
      %p101 = por %p99, %p100
      %p102 = scmp.ne.s32.totalorder %s94, %s96
      %p103 = scmp.eq.s32.totalorder %s18, 1
      %p104 = por %p102, %p103
      %p105 = scmp.ne.s32.totalorder %s96, %s97
      %p106 = scmp.eq.s32.totalorder %s18, 0
      %p107 = por %p105, %p106
      %p108 = scmp.ne.s32.totalorder %s96, %s97
      %p109 = scmp.eq.s32.totalorder %s19, 1
      %p110 = por %p108, %p109
      %p112 = scmp.ne.s32.totalorder %s97, %s111
      %p113 = scmp.eq.s32.totalorder %s19, 0
      %p114 = por %p112, %p113
      %s115 = ssub.s32 %s13, %s20
      %p116 = scmp.eq.s32.totalorder %s115, 0
      %s118 = sadd.s32 %s117, 1
      %s119 = scalar_select %p116, %s117, %s118
      %p122 = pneg %p116
      %p123 = scmp.eq.s32.totalorder %s13, 1
      %p124 = por %p122, %p123
      %p125 = scmp.ne.s32.totalorder %s117, %s120
      %p126 = scmp.eq.s32.totalorder %s13, 0
      %p127 = por %p125, %p126
      %p128 = scmp.ne.s32.totalorder %s117, %s120
      %p129 = scmp.eq.s32.totalorder %s18, 1
      %p130 = por %p128, %p129
      %p131 = scmp.ne.s32.totalorder %s120, %s121
      %p132 = scmp.eq.s32.totalorder %s18, 0
      %p133 = por %p131, %p132
      %p134 = scmp.ne.s32.totalorder %s120, %s121
      %p135 = scmp.eq.s32.totalorder %s19, 1
      %p136 = por %p134, %p135
      %p138 = scmp.ne.s32.totalorder %s121, %s137
      %p139 = scmp.eq.s32.totalorder %s19, 0
      %p140 = por %p138, %p139
      %p141 = scmp.le.s32.totalorder 1, %s13
      %p142 = scmp.lt.s32.totalorder %s13, 3
      %p143 = pnand %p141, %p142
      %p144 = pneg %p143
      // Predicated region
      $region9: #{tpu_custom_call.1} parent=5 // pred_check
        _
      $region10: #{tpu_custom_call.1} parent=5 // pred_check_branch
        %146 = sbr.rel (%p143) target = $region12
      $region11: #{tpu_custom_call.1} parent=5 // pred_region
        %s147 = ssub.s32 %s13, 1
        // Predicated region
        $region13: #{tpu_custom_call.1} parent=11 // pred_check
          %p148 = pneg %p86
        $region14: #{tpu_custom_call.1} parent=11 // pred_check_branch
          %150 = sbr.rel (%p148) target = $region16
        $region15: #{tpu_custom_call.1} parent=11 // pred_region
          _
        $region16: #{tpu_custom_call.1} parent=11 // pred_fallthru
          _
        // Predicated region
        $region17: #{tpu_custom_call.1} parent=11 // pred_check
          %p151 = pneg %p107
        $region18: #{tpu_custom_call.1} parent=11 // pred_check_branch
          %153 = sbr.rel (%p151) target = $region20
        $region19: #{tpu_custom_call.1} parent=11 // pred_region
          _
        $region20: #{tpu_custom_call.1} parent=11 // pred_fallthru
          _
      $region12: #{tpu_custom_call.1} parent=5 // pred_fallthru
        _
      %p154 = scmp.lt.s32.totalorder %s13, 2
      // Predicated region
      $region21: #{tpu_custom_call.1} parent=5 // pred_check
        %p155 = pneg %p154
      $region22: #{tpu_custom_call.1} parent=5 // pred_check_branch
        %157 = sbr.rel (%p155) target = $region24
      $region23: #{tpu_custom_call.1} parent=5 // pred_region
        // Predicated region
        $region25: #{tpu_custom_call.1} parent=23 // pred_check
          %p158 = pneg %p33
        $region26: #{tpu_custom_call.1} parent=23 // pred_check_branch
          %160 = sbr.rel (%p158) target = $region28
        $region27: #{tpu_custom_call.1} parent=23 // pred_region
          %p161 = scmp.lt.s32.totalorder %s13, 1
          %s162 = scalar_select %p161, %s13, 1
          %s163 = smul.addr %s162, 2
          %s164 = smul.addr %s163, 8
          %s165 = scalar_lea.vmem %s0, %s164
        $region28: #{tpu_custom_call.1} parent=23 // pred_fallthru
          _
        // Predicated region
        $region29: #{tpu_custom_call.1} parent=23 // pred_check
          %p166 = pneg %p59
        $region30: #{tpu_custom_call.1} parent=23 // pred_check_branch
          %168 = sbr.rel (%p166) target = $region32
        $region31: #{tpu_custom_call.1} parent=23 // pred_region
          %p169 = scmp.lt.s32.totalorder %s13, 1
          %s170 = scalar_select %p169, %s13, 1
          %s171 = smul.addr %s170, 2
          %s172 = smul.addr %s171, 8
          %s173 = scalar_lea.vmem %s1, %s172
        $region32: #{tpu_custom_call.1} parent=23 // pred_fallthru
          _
      $region24: #{tpu_custom_call.1} parent=5 // pred_fallthru
        _
      %p174 = scmp.le.s32.totalorder 1, %s13
      %p175 = scmp.lt.s32.totalorder %s13, 3
      %p176 = pnand %p174, %p175
      %p177 = pneg %p176
      // Predicated region
      $region33: #{tpu_custom_call.1} parent=5 // pred_check
        _
      $region34: #{tpu_custom_call.1} parent=5 // pred_check_branch
        %179 = sbr.rel (%p176) target = $region36
      $region35: #{tpu_custom_call.1} parent=5 // pred_region
        %s180 = ssub.s32 %s13, 1
        %p181 = scmp.lt.s32.totalorder %s18, 1
        %s182 = scalar_select %p181, %s18, 1
        %s183 = smul.addr %s182, 2
        %s184 = smul.addr %s183, 8
        %s185 = scalar_lea.vmem %s0, %s184
        %p186 = pneg %p39
        %p187 = pneg %p36
        %p188 = scmp.lt.s32.totalorder %s18, 1
        %s189 = scalar_select %p188, %s18, 1
        %s190 = smul.addr %s189, 2
        %s191 = smul.addr %s190, 8
        %s192 = scalar_lea.vmem %s1, %s191
        %p193 = pneg %p65
        %p194 = pneg %p62
        %p195 = pneg %p86
        %p196 = pneg %p83
        %p197 = pneg %p107
        %p198 = pneg %p104
        %p199 = pneg %p133
        %p200 = pneg %p130
        %s201 = sand.u32 %s120, 1
        %s202 = scalar_lea.sflag [#allocation3], %s201
        %s203 = sand.u32 %s120, 1
        %s204 = smul.addr %s203, 16
        %s205 = scalar_lea.vmem [#allocation2], %s204
        %p206 = scmp.lt.s32.totalorder %s18, 1
        %s207 = scalar_select %p206, %s18, 1
        %s208 = smul.addr %s207, 2
        %s209 = smul.addr %s208, 8
        %s210 = scalar_lea.vmem %s0, %s209
        %p211 = scmp.lt.s32.totalorder %s18, 1
        %s212 = scalar_select %p211, %s18, 1
        %s213 = smul.addr %s212, 2
        %s214 = smul.addr %s213, 8
        %s215 = scalar_lea.vmem %s1, %s214
        %v216 = vld [vmem:[%s210] sm:$0xff]
        %v217 = vld [vmem:[%s210 + $0x8] sm:$0xff]
        %v218 = vld [vmem:[%s2] sm:$0xff]
        %v219 = vld [vmem:[%s2 + $0x8] sm:$0xff]
        %v220 = vld [vmem:[%s3] sm:$0x3]
        %v222 = vlaneseq
        %v223 = vshrl.u32 %v222, 7
        %v224 = vsub.s32 0, %v223
        %v225 = vrot.slane %v220, %v224
        %v226 = vlaneseq
        %v227 = vshrl.u32 %v226, 7
        %v228 = vsub.s32 1, %v227
        %v229 = vrot.slane %v220, %v228
        %vm232 = vcmask 64512
        %v234 = vsel %vm232, %v216, 0
        %v237 = vsel %vm232, %v217, 0
        %239 = vmatprep.subr.mxu0 0.0
        %240 = vmatpush1.msra.mxu0 0.0
        %241 = vmatprep.subr.mxu0 0.0
        %242 = vmatpush1.msra.mxu0 0.0
        %243 = vmatprep.subr.mxu0 0.0
        %244 = vmatpush1.msra.mxu0 0.0
        %245 = vmatprep.subr.mxu0 0.0
        %246 = vmatpush1.msra.mxu0 0.0
        %247 = vmatprep.subr.mxu0 0.0
        %248 = vmatpush1.msra.mxu0 0.0
        %249 = vmatprep.subr.mxu0 0.0
        %250 = vmatpush1.msra.mxu0 0.0
        %251 = vmatprep.subr.mxu0 0.0
        %252 = vmatpush1.msra.mxu0 0.0
        %253 = vmatprep.subr.mxu0 0.0
        %254 = vmatpush1.msra.mxu0 0.0
        %255 = vmatprep.subr.mxu0 0.0
        %256 = vmatpush1.msra.mxu0 0.0
        %257 = vmatprep.subr.mxu0 0.0
        %258 = vmatpush1.msra.mxu0 0.0
        %259 = vmatprep.subr.mxu0 0.0
        %260 = vmatpush1.msra.mxu0 0.0
        %261 = vmatprep.subr.mxu0 0.0
        %262 = vmatpush1.msra.mxu0 0.0
        %263 = vmatprep.subr.mxu0 0.0
        %264 = vmatpush1.msra.mxu0 0.0
        %265 = vmatprep.subr.mxu0 0.0
        %266 = vmatpush1.msra.mxu0 0.0
        %267 = vmatprep.subr.mxu0 0.0
        %268 = vmatpush1.msra.mxu0 0.0
        %269 = vmatprep.subr.mxu0 %v219
        %270 = vmatpush1.msra.mxu0 %v218
        %271 = vmatprep.subr.mxu0 0.0
        %272 = vmatpush2.msra.mxu0 0.0
        %273 = vmatprep.subr.mxu0 0.0
        %274 = vmatpush2.msra.mxu0 0.0
        %275 = vmatprep.subr.mxu0 0.0
        %276 = vmatpush2.msra.mxu0 0.0
        %277 = vmatprep.subr.mxu0 0.0
        %278 = vmatpush2.msra.mxu0 0.0
        %279 = vmatprep.subr.mxu0 0.0
        %280 = vmatpush2.msra.mxu0 0.0
        %281 = vmatprep.subr.mxu0 0.0
        %282 = vmatpush2.msra.mxu0 0.0
        %283 = vmatprep.subr.mxu0 0.0
        %284 = vmatpush2.msra.mxu0 0.0
        %285 = vmatprep.subr.mxu0 0.0
        %286 = vmatpush2.msra.mxu0 0.0
        %287 = vmatprep.subr.mxu0 0.0
        %288 = vmatpush2.msra.mxu0 0.0
        %289 = vmatprep.subr.mxu0 0.0
        %290 = vmatpush2.msra.mxu0 0.0
        %291 = vmatprep.subr.mxu0 0.0
        %292 = vmatpush2.msra.mxu0 0.0
        %293 = vmatprep.subr.mxu0 0.0
        %294 = vmatpush2.msra.mxu0 0.0
        %295 = vmatprep.subr.mxu0 0.0
        %296 = vmatpush2.msra.mxu0 0.0
        %297 = vmatprep.subr.mxu0 0.0
        %298 = vmatpush2.msra.mxu0 0.0
        %299 = vmatprep.subr.mxu0 0.0
        %300 = vmatpush2.msra.mxu0 0.0
        %301 = vmatprep.subr.mxu0 0.0
        %302 = vmatpush2.msra.mxu0 0.0
        %303 = vmatprep.mubr.f32.mxu0 0.0
        %304 = vmatmul.mubr.f32.gmra.mxu0 %v234
        %v305 = vpop.f32.mrf.mxu0
        %v306 = vadd.f32 %v225, %v305
        %v307 = vpop.f32.mrf.mxu0
        %v308 = vadd.f32 %v229, %v307
        %309 = vmatprep.mubr.f32.mxu0 0.0
        %310 = vmatmul.mubr.f32.gmra.mxu0 %v237
        %v311 = vpop.f32.mrf.mxu0
        %v312 = vadd.f32 %v225, %v311
        %v313 = vpop.f32.mrf.mxu0
        %v314 = vadd.f32 %v229, %v313
        %315 = vdwg.mxu0
        %318 = vrot.lane.b32.xlu0 %v306, 96
        %v319 = vpop.permute.xlu0 %318
        %320 = vrot.lane.b32.xlu0 %v312, 96
        %v321 = vpop.permute.xlu0 %320
        %324 = vrot.lane.b32.xlu0 %v306, 64
        %v325 = vpop.permute.xlu0 %324
        %326 = vrot.lane.b32.xlu0 %v312, 64
        %v327 = vpop.permute.xlu0 %326
        %330 = vrot.lane.b32.xlu0 %v306, 32
        %v331 = vpop.permute.xlu0 %330
        %332 = vrot.lane.b32.xlu0 %v312, 32
        %v333 = vpop.permute.xlu0 %332
        %v336 = vld [vmem:[%s215] sm:$0xff]
        %v337 = vld [vmem:[%s215 + $0x8] sm:$0xff]
        %vm338 = vcmask 523264
        %v340 = vsel %vm338, %v336, 0
        %v343 = vsel %vm338, %v337, 0
        %345 = vmatprep.subr.mxu0 0.0
        %346 = vmatpush1.msra.mxu0 0.0
        %347 = vmatprep.subr.mxu0 0.0
        %348 = vmatpush1.msra.mxu0 0.0
        %349 = vmatprep.subr.mxu0 0.0
        %350 = vmatpush1.msra.mxu0 0.0
        %351 = vmatprep.subr.mxu0 0.0
        %352 = vmatpush1.msra.mxu0 0.0
        %353 = vmatprep.subr.mxu0 0.0
        %354 = vmatpush1.msra.mxu0 0.0
        %355 = vmatprep.subr.mxu0 0.0
        %356 = vmatpush1.msra.mxu0 0.0
        %357 = vmatprep.subr.mxu0 0.0
        %358 = vmatpush1.msra.mxu0 0.0
        %359 = vmatprep.subr.mxu0 0.0
        %360 = vmatpush1.msra.mxu0 0.0
        %361 = vmatprep.subr.mxu0 0.0
        %362 = vmatpush1.msra.mxu0 %v333
        %363 = vmatprep.subr.mxu0 0.0
        %364 = vmatpush1.msra.mxu0 %v331
        %365 = vmatprep.subr.mxu0 0.0
        %366 = vmatpush1.msra.mxu0 %v327
        %367 = vmatprep.subr.mxu0 0.0
        %368 = vmatpush1.msra.mxu0 %v325
        %369 = vmatprep.subr.mxu0 0.0
        %370 = vmatpush1.msra.mxu0 %v321
        %371 = vmatprep.subr.mxu0 0.0
        %372 = vmatpush1.msra.mxu0 %v319
        %373 = vmatprep.subr.mxu0 0.0
        %374 = vmatpush1.msra.mxu0 %v312
        %375 = vmatprep.subr.mxu0 0.0
        %376 = vmatpush1.msra.mxu0 %v306
        %377 = vmatprep.subr.mxu0 0.0
        %378 = vmatpush2.msra.mxu0 0.0
        %379 = vmatprep.subr.mxu0 0.0
        %380 = vmatpush2.msra.mxu0 0.0
        %381 = vmatprep.subr.mxu0 0.0
        %382 = vmatpush2.msra.mxu0 0.0
        %383 = vmatprep.subr.mxu0 0.0
        %384 = vmatpush2.msra.mxu0 0.0
        %385 = vmatprep.subr.mxu0 0.0
        %386 = vmatpush2.msra.mxu0 0.0
        %387 = vmatprep.subr.mxu0 0.0
        %388 = vmatpush2.msra.mxu0 0.0
        %389 = vmatprep.subr.mxu0 0.0
        %390 = vmatpush2.msra.mxu0 0.0
        %391 = vmatprep.subr.mxu0 0.0
        %392 = vmatpush2.msra.mxu0 0.0
        %393 = vmatprep.subr.mxu0 0.0
        %394 = vmatpush2.msra.mxu0 0.0
        %395 = vmatprep.subr.mxu0 0.0
        %396 = vmatpush2.msra.mxu0 0.0
        %397 = vmatprep.subr.mxu0 0.0
        %398 = vmatpush2.msra.mxu0 0.0
        %399 = vmatprep.subr.mxu0 0.0
        %400 = vmatpush2.msra.mxu0 0.0
        %401 = vmatprep.subr.mxu0 0.0
        %402 = vmatpush2.msra.mxu0 0.0
        %403 = vmatprep.subr.mxu0 0.0
        %404 = vmatpush2.msra.mxu0 0.0
        %405 = vmatprep.subr.mxu0 0.0
        %406 = vmatpush2.msra.mxu0 0.0
        %407 = vmatprep.subr.mxu0 0.0
        %408 = vmatpush2.msra.mxu0 0.0
        %409 = vmatprep.mubr.f32.mxu0 0.0
        %410 = vmatmul.mubr.f32.gmra.mxu0 %v340
        %v411 = vpop.f32.mrf.mxu0
        %v412 = vadd.f32 %v308, %v411
        %v413 = vpop.f32.mrf.mxu0
        %414 = vmatprep.mubr.f32.mxu0 0.0
        %415 = vmatmul.mubr.f32.gmra.mxu0 %v343
        %v416 = vpop.f32.mrf.mxu0
        %v417 = vadd.f32 %v314, %v416
        %v418 = vpop.f32.mrf.mxu0
        %419 = vdwg.mxu0
        %v420 = vtanh.pop %v412
        %v421 = vtanh.pop %v417
        %vm422 = vcmask 261120
        %423 = vst.msk [vmem:[%s205] sm:$0xff] %vm422, %v420
        %424 = vst.msk [vmem:[%s205 + $0x8] sm:$0xff] %vm422, %v421
        %s425 = sand.u32 %s120, 1
        %s426 = scalar_lea.sflag [#allocation3], %s425
        %s427 = sand.u32 %s120, 1
        %s428 = smul.addr %s427, 16
        %s429 = scalar_lea.vmem [#allocation2], %s428
        // Predicated region
        $region37: #{tpu_custom_call.1} parent=35 // pred_check
          %p430 = pneg %p130
        $region38: #{tpu_custom_call.1} parent=35 // pred_check_branch
          %432 = sbr.rel (%p430) target = $region40
        $region39: #{tpu_custom_call.1} parent=35 // pred_region
          %s434 = ssub.s32 256, 256
          %435 = vsyncadd %s426, %s434
          %s436 = smul.addr %s18, 2
          %s437 = smul.addr %s436, 128
          %s438 = scalar_lea.hbm %s4, %s437
          %s439 = sshll.u32 %s429, 4
          %s440 = int_to_ptr.vmem [resolvable:$true] %s439
          %445 = dma.vmem_to_hbm [thread:$0]  %s440, 256, %s438, %s426, 128, 128, 8
        $region40: #{tpu_custom_call.1} parent=35 // pred_fallthru
          _
      $region36: #{tpu_custom_call.1} parent=5 // pred_fallthru
        _
      %p446 = scmp.le.s32.totalorder 2, %s13
      // Predicated region
      $region41: #{tpu_custom_call.1} parent=5 // pred_check
        %p447 = pneg %p446
      $region42: #{tpu_custom_call.1} parent=5 // pred_check_branch
        %449 = sbr.rel (%p447) target = $region44
      $region43: #{tpu_custom_call.1} parent=5 // pred_region
        %s450 = ssub.s32 %s13, 2
        // Predicated region
        $region45: #{tpu_custom_call.1} parent=43 // pred_check
          %p451 = pneg %p136
        $region46: #{tpu_custom_call.1} parent=43 // pred_check_branch
          %453 = sbr.rel (%p451) target = $region48
        $region47: #{tpu_custom_call.1} parent=43 // pred_region
          %s454 = sand.u32 %s121, 1
          %s455 = scalar_lea.sflag [#allocation3], %s454
          %s456 = sand.u32 %s121, 1
          %s457 = smul.addr %s456, 16
          %s458 = scalar_lea.vmem [#allocation2], %s457
          %459 = dma.done %s455, 256
        $region48: #{tpu_custom_call.1} parent=43 // pred_fallthru
          _
      $region44: #{tpu_custom_call.1} parent=5 // pred_fallthru
        _
    $region6: #{tpu_custom_call.1} parent=1 // loop_footer
      %s17 = sadd.s32 1, %s13
    $region7: #{tpu_custom_call.1} parent=1 // loop_footer_branch
      %12 = sbr.rel target = $region3
    $region8: #{tpu_custom_call.1} parent=1 // loop_exit
      _
    %460 = vsyncpa [#allocation3], 1
    %s461 = scalar_lea.sflag [#allocation3], 1
    %462 = vsyncpa %s461, 1

</llo_original>
